<compile_context>
chip_gen: v7x
topology: tpu7x:2x2x1
jax: 0.10.0
libtpu: 0.0.40
codegen_flags: <defaults>
</compile_context>

<pallas_src>
import jax
import jax.numpy as jnp
from jax.experimental import pallas as pl
from jax.experimental.pallas import tpu as pltpu

D_MODEL = 768
NUM_HEADS = 8
HEAD_DIM = D_MODEL // NUM_HEADS
MAX_SEQ_LEN = 512

EDGE_TILE_MAX = 256                 # MXU-filling row tile for per-edge work
NODE_TILE_MAX = 256                 # MXU-filling row tile for per-node work
BATCH_TILE = 8                      # masked-mean pooling batch tile
VMEM_LIMIT = 40 * 1024 * 1024       # conservative vs v7x's 64 MiB physical VMEM


# ----------------------------------------------------------------------------
# helpers
# ----------------------------------------------------------------------------
def _round_up(n, m):
    return ((n + m - 1) // m) * m


def _pad_rows(a, mult):
    pad = (-a.shape[0]) % mult
    if pad == 0:
        return a
    return jnp.concatenate([a, jnp.zeros((pad,) + a.shape[1:], a.dtype)], axis=0)


def _choose_tile(rows, max_tile, mult):
    # big enough to fill the MXU, small enough that tiny graphs don't over-pad
    return min(max_tile, _round_up(max(rows, 1), mult))


def _rep_spec(shape):
    nd = len(shape)
    return pl.BlockSpec(shape, lambda i, nd=nd: (0,) * nd)


# ----------------------------------------------------------------------------
# Kernel 1: BertEmb masked mean pooling (tiled over batch, bf16 in / f32 acc)
# ----------------------------------------------------------------------------
def masked_mean_kernel(h_ref, m_ref, o_ref):
    h = h_ref[...].astype(jnp.float32)      # (TB, S, D)
    m = m_ref[...]                          # (TB, S, 1) f32
    mo_sum = jnp.sum(h * m, axis=1)         # (TB, D)
    cf = jnp.sum(m, axis=1)                 # (TB, 1)
    cf = jnp.where(cf == 0.0, 1.0, cf)      # cf[cf == 0] = 1
    o_ref[...] = mo_sum * pl.reciprocal(cf, approx=True)


def masked_mean_pool(hidden, mask3):
    B, S, D = hidden.shape
    hp = _pad_rows(hidden, BATCH_TILE)
    mp = _pad_rows(mask3, BATCH_TILE)
    Bp = hp.shape[0]
    out = pl.pallas_call(
        masked_mean_kernel,
        out_shape=jax.ShapeDtypeStruct((Bp, D), jnp.float32),
        grid=(Bp // BATCH_TILE,),
        in_specs=[pl.BlockSpec((BATCH_TILE, S, D), lambda i: (i, 0, 0)),
                  pl.BlockSpec((BATCH_TILE, S, 1), lambda i: (i, 0, 0))],
        out_specs=pl.BlockSpec((BATCH_TILE, D), lambda i: (i, 0)),
        compiler_params=pltpu.CompilerParams(
            dimension_semantics=("parallel",),
            vmem_limit_bytes=VMEM_LIMIT),
    )(hp, mp)
    return out[:B]


# ----------------------------------------------------------------------------
# Kernel 2a: per-edge work of one GNNL layer
# ----------------------------------------------------------------------------
def gnn_edge_kernel(xs_ref, xd_ref, ea_ref,
                    qwh_ref, qbh_ref, ckeh_ref, ckxh_ref, ckbh_ref,
                    aww_ref, awb_ref, vww_ref, vwb_ref, hpt_ref,
                    a_ref, wv_ref):
    f32 = jnp.float32
    bf16 = jnp.bfloat16
    xs = xs_ref[...]          # (TE, D) bf16  = x[edge_index[0]]
    xd = xd_ref[...]          # (TE, D) bf16  = x[edge_index[1]]
    ea = ea_ref[...]          # (TE, D) bf16  = edge_attr

    # einsum('bhd,bhq->bh', wq, wk) factorises into per-head sums of q and k;
    # the head-pooling matrix is folded into the weights host-side, so the
    # q/k projections collapse from (D,D) to (D,H) matmuls.
    qh = jnp.dot(xd, qwh_ref[...], preferred_element_type=f32) + qbh_ref[...]      # (TE, H)
    kh = (jnp.dot(ea, ckeh_ref[...], preferred_element_type=f32)
          + jnp.dot(xs, ckxh_ref[...], preferred_element_type=f32)
          + ckbh_ref[...])                                                          # (TE, H)

    aw = qh * kh * (1.0 / jnp.sqrt(jnp.float32(D_MODEL)))
    aw = jnp.where(aw > 0, aw, 0.2 * aw)                                            # LeakyReLU(0.2)
    a = jnp.exp(jnp.dot(aw, aww_ref[...], preferred_element_type=f32) + awb_ref[...])  # (TE, H)

    v = jnp.dot(xs, vww_ref[...], preferred_element_type=f32) + vwb_ref[...]        # vw(x_j)
    # head broadcast: hp_t is exactly 0/1 so bf16 operands are safe (f32 acc)
    a_full = jnp.dot(a.astype(bf16), hpt_ref[...], preferred_element_type=f32)      # (TE, D)

    a_ref[...] = a
    wv_ref[...] = (a_full * v).astype(bf16)   # un-normalised attention * value (bf16 to HBM)


# ----------------------------------------------------------------------------
# Kernel 2b: per-node work of one GNNL layer (sgnn gated update)
# ----------------------------------------------------------------------------
def gnn_node_kernel(x_ref, agg_ref, sc_ref, deg_ref, hpt_ref,
                    cww_ref, cwb_ref, lxw_ref, lxb_ref,
                    la1x_ref, la1h_ref, la1b_ref, gw_ref, gb_ref,
                    o_ref):
    f32 = jnp.float32
    bf16 = jnp.bfloat16
    x = x_ref[...]            # (TN, D) f32
    agg = agg_ref[...]        # (TN, D) f32  = segment_sum(a * v, dst)   (f32 accumulated)
    sc = sc_ref[...]          # (TN, H) f32  = segment_sum(a, dst)
    deg = deg_ref[...]        # (TN, 1) f32  = in-degree

    # attention normalisation: attn_e = a_e / sc[dst_e]  (guard sc == 0 -> 1);
    # factored out of the per-edge division since sc is constant per node+head.
    sc = jnp.where(sc == 0.0, 1.0, sc)
    inv = pl.reciprocal(sc, approx=True)                                            # (TN, H)
    inv_full = jnp.dot(inv.astype(bf16), hpt_ref[...], preferred_element_type=f32)  # (TN, D)
    msum = agg * inv_full                          # = sum_e attn_e * vw(x_j)_e

    # aggr='add' of cw(attn * v): linear cw commutes with the sum, bias * degree
    h = (jnp.dot(msum.astype(bf16), cww_ref[...], preferred_element_type=f32)
         + deg * cwb_ref[...])                                                      # (TN, D)

    xb = x.astype(bf16)
    lx = jnp.dot(xb, lxw_ref[...], preferred_element_type=f32) + lxb_ref[...]
    # la1 = Linear(2D, D)(cat([lx, h])) computed with a split weight (no concat)
    la1 = (jnp.dot(lx.astype(bf16), la1x_ref[...], preferred_element_type=f32)
           + jnp.dot(h.astype(bf16), la1h_ref[...], preferred_element_type=f32)
           + la1b_ref[...])
    la1 = jnp.where(la1 > 0, la1, 0.2 * la1)                                        # LeakyReLU(0.2)

    # softmax over the 2 gate logits == sigmoid of the logit difference
    # (la2 weights folded into a single (D,1) column host-side; dropout == identity)
    z = jnp.dot(la1.astype(bf16), gw_ref[...], preferred_element_type=f32) + gb_ref[...]
    g1 = pl.reciprocal(1.0 + jnp.exp(-z), approx=True)                              # (TN, 1)
    o_ref[...] = x + (h - x) * g1              # = x * (1 - g1) + h * g1


# ----------------------------------------------------------------------------
# Wrappers
# ----------------------------------------------------------------------------
def gnn_edge(lp, x_src, x_dst, edge_attr, hp_t):
    E = x_src.shape[0]
    tile = _choose_tile(E, EDGE_TILE_MAX, 16)          # multiple of 16 (bf16 pack)
    xs = _pad_rows(x_src, tile)
    xd = _pad_rows(x_dst, tile)
    ea = _pad_rows(edge_attr, tile)
    Ep = xs.shape[0]
    D, H = D_MODEL, NUM_HEADS
    weights = [lp["qwh"], lp["qbh"], lp["ckeh"], lp["ckxh"], lp["ckbh"],
               lp["aw_w"], lp["aw_b"], lp["vw_w"], lp["vw_b"], hp_t]
    args = [xs, xd, ea] + weights
    row_spec = pl.BlockSpec((tile, D), lambda i: (i, 0))
    in_specs = [row_spec, row_spec, row_spec] + [_rep_spec(w.shape) for w in weights]
    flops = 2 * Ep * (D * (3 * H + D) + H * (H + D))
    bytes_acc = (sum(int(a_.size) * a_.dtype.itemsize for a_ in args)
                 + Ep * (H * 4 + D * 2))
    a, wv = pl.pallas_call(
        gnn_edge_kernel,
        out_shape=(jax.ShapeDtypeStruct((Ep, H), jnp.float32),
                   jax.ShapeDtypeStruct((Ep, D), jnp.bfloat16)),
        grid=(Ep // tile,),
        in_specs=in_specs,
        out_specs=(pl.BlockSpec((tile, H), lambda i: (i, 0)),
                   pl.BlockSpec((tile, D), lambda i: (i, 0))),
        compiler_params=pltpu.CompilerParams(
            dimension_semantics=("parallel",),
            vmem_limit_bytes=VMEM_LIMIT),
        cost_estimate=pl.CostEstimate(flops=flops, transcendentals=Ep * H,
                                      bytes_accessed=bytes_acc),
    )(*args)
    return a[:E], wv[:E]


def gnn_node(lp, x, agg_raw, sc, deg, hp_t):
    N = x.shape[0]
    tile = _choose_tile(N, NODE_TILE_MAX, 8)
    xp = _pad_rows(x, tile)
    aggp = _pad_rows(agg_raw, tile)
    scp = _pad_rows(sc, tile)
    degp = _pad_rows(deg, tile)
    Np = xp.shape[0]
    D, H = D_MODEL, NUM_HEADS
    weights = [hp_t, lp["cw_w"], lp["cw_b"], lp["lx_w"], lp["lx_b"],
               lp["la1x"], lp["la1h"], lp["la1_b"], lp["gate_w"], lp["gate_b"]]
    args = [xp, aggp, scp, degp] + weights
    in_specs = [pl.BlockSpec((tile, D), lambda i: (i, 0)),
                pl.BlockSpec((tile, D), lambda i: (i, 0)),
                pl.BlockSpec((tile, H), lambda i: (i, 0)),
                pl.BlockSpec((tile, 1), lambda i: (i, 0))] + \
               [_rep_spec(w.shape) for w in weights]
    flops = 2 * Np * D * (4 * D + H + 2)
    bytes_acc = sum(int(a_.size) * a_.dtype.itemsize for a_ in args) + Np * D * 4
    out = pl.pallas_call(
        gnn_node_kernel,
        out_shape=jax.ShapeDtypeStruct((Np, D), jnp.float32),
        grid=(Np // tile,),
        in_specs=in_specs,
        out_specs=pl.BlockSpec((tile, D), lambda i: (i, 0)),
        compiler_params=pltpu.CompilerParams(
            dimension_semantics=("parallel",),
            vmem_limit_bytes=VMEM_LIMIT),
        cost_estimate=pl.CostEstimate(flops=flops, transcendentals=Np * 10,
                                      bytes_accessed=bytes_acc),
    )(*args)
    return out[:N]


def gnn_layer(lp, x, edge_attr_bf, edge_index, hp_t):
    """One GNNL layer (arch='sgnn', use_pred=True, eval mode)."""
    # TODO(synk): for very large E the x[src]/x[dst] gathers could be moved
    # in-kernel via scalar-prefetched indices + per-row DMA; done host-side here.
    N = x.shape[0]
    src = edge_index[0]
    dst = edge_index[1]
    xb = x.astype(jnp.bfloat16)                      # cast once, gather in bf16
    x_src = xb[src]                                  # x_j
    x_dst = xb[dst]                                  # x_i
    a, wv = gnn_edge(lp, x_src, x_dst, edge_attr_bf, hp_t)
    # index-based scatter-add at destination nodes (O(E*D)); wv is bf16 in HBM
    # but the segment-sum accumulates in f32 (explicit cast fused into scatter).
    E = a.shape[0]
    sc = jax.ops.segment_sum(a, dst, num_segments=N)                            # (N, H)
    agg_raw = jax.ops.segment_sum(wv.astype(jnp.float32), dst, num_segments=N)  # (N, D)
    deg = jax.ops.segment_sum(jnp.ones((E, 1), jnp.float32), dst, num_segments=N)
    return gnn_node(lp, x, agg_raw, sc, deg, hp_t)


# ----------------------------------------------------------------------------
# Parameters (deterministic init); big weights stored bf16, biases f32
# ----------------------------------------------------------------------------
def _init_linear(key, fan_in, fan_out):
    kw, kb = jax.random.split(key)
    bound = 1.0 / jnp.sqrt(jnp.float32(fan_in))
    w = jax.random.uniform(kw, (fan_in, fan_out), jnp.float32, -bound, bound)
    b = jax.random.uniform(kb, (1, fan_out), jnp.float32, -bound, bound)
    return w, b


def init_params(key, vocab, num_layers):
    hp = (jnp.arange(D_MODEL)[:, None] // HEAD_DIM
          == jnp.arange(NUM_HEADS)[None, :]).astype(jnp.float32)   # (D, H) head pooling
    keys = jax.random.split(key, 2 + num_layers)
    bf16 = jnp.bfloat16
    params = {"tok_emb": (0.02 * jax.random.normal(keys[0], (vocab, D_MODEL),
                                                   jnp.float32)).astype(bf16),
              "hp_t": hp.T.astype(bf16)}                            # (H, D), exactly 0/1
    layers = []
    for li in range(num_layers):
        lkeys = jax.random.split(keys[2 + li], 8)
        ck_w, ck_b = _init_linear(lkeys[0], 2 * D_MODEL, D_MODEL)
        qw_w, qw_b = _init_linear(lkeys[1], D_MODEL, D_MODEL)
        vw_w, vw_b = _init_linear(lkeys[2], D_MODEL, D_MODEL)
        aw_w, aw_b = _init_linear(lkeys[3], NUM_HEADS, NUM_HEADS)
        cw_w, cw_b = _init_linear(lkeys[4], D_MODEL, D_MODEL)
        lx_w, lx_b = _init_linear(lkeys[5], D_MODEL, D_MODEL)
        la1_w, la1_b = _init_linear(lkeys[6], 2 * D_MODEL, D_MODEL)
        la2_w, la2_b = _init_linear(lkeys[7], D_MODEL, 2)
        lp = {
            # einsum('bhd,bhq->bh') only consumes per-head sums of q/k, so the
            # head pooling is folded into the projections -> (D, H) weights.
            "qwh": (qw_w @ hp).astype(bf16), "qbh": qw_b @ hp,
            "ckeh": (ck_w[:D_MODEL] @ hp).astype(bf16),
            "ckxh": (ck_w[D_MODEL:] @ hp).astype(bf16),
            "ckbh": ck_b @ hp,
            "aw_w": aw_w, "aw_b": aw_b,
            "vw_w": vw_w.astype(bf16), "vw_b": vw_b,
            "cw_w": cw_w.astype(bf16), "cw_b": cw_b,
            "lx_w": lx_w.astype(bf16), "lx_b": lx_b,
            "la1x": la1_w[:D_MODEL].astype(bf16),     # split -> no concatenate
            "la1h": la1_w[D_MODEL:].astype(bf16),
            "la1_b": la1_b,
            # softmax over 2 logits == sigmoid(z1 - z0): fold la2 into one column
            "gate_w": (la2_w[:, 1:2] - la2_w[:, 0:1]).astype(bf16),   # (D, 1)
            "gate_b": la2_b[:, 1:2] - la2_b[:, 0:1],                  # (1, 1)
        }
        layers.append(lp)
    params["gnn_layers"] = layers
    return params


# ----------------------------------------------------------------------------
# Model forward (Pallas-backed)
# ----------------------------------------------------------------------------
def bert_emb(params, token_ids):
    # TODO(synk): the pretrained BERT encoder (AutoModel.from_pretrained) has no
    # in-script equivalent; its last_hidden_state is stood in by a deterministic
    # bf16 token-embedding lookup. The masked mean pooling (the actual reduction
    # in BertEmb.embed) runs in the Pallas kernel.
    if token_ids.shape[1] > MAX_SEQ_LEN:
        token_ids = token_ids[:, :MAX_SEQ_LEN]
    mask = (token_ids > 0).astype(jnp.float32)            # (B, S)
    hidden = params["tok_emb"][token_ids]                  # (B, S, D) bf16
    return masked_mean_pool(hidden, mask[..., None])


def embed_cqa(params, token_ids):
    return bert_emb(params, token_ids)


def embed_subg(params, x_tok, xi, edge_index, edge_attr_tok, edge_attr_i):
    feats = bert_emb(params, x_tok)                        # (num_texts, D) f32
    sf = feats[xi]                                         # (N, D) f32
    props = bert_emb(params, edge_attr_tok)                # (num_edge_texts, D) f32
    edge_attr_bf = props.astype(jnp.bfloat16)[edge_attr_i]  # (E, D) bf16, reused per layer
    hp_t = params["hp_t"]
    h = sf
    for lp in params["gnn_layers"]:
        h = gnn_layer(lp, h, edge_attr_bf, edge_index, hp_t)
    return h


def model_forward(params, cqa=None, positive_sbg=None, negative_sbg=None):
    cqa_out = embed_cqa(params, cqa) if cqa is not None else None
    sbg = embed_subg(params, *positive_sbg) if positive_sbg is not None else None
    nsbg = embed_subg(params, *negative_sbg) if negative_sbg is not None else None
    return cqa_out, sbg, nsbg


# ----------------------------------------------------------------------------
if __name__ == "__main__":
    VOCAB = 32
    params = init_params(jax.random.PRNGKey(0), VOCAB, num_layers=1)  # Model(d=1)

    keys = jax.random.split(jax.random.PRNGKey(0), 12)
    # cqa: token ids (batch=2, seq=8); zeros act as padding (mask = x > 0)
    cqa = jax.random.randint(keys[0], (2, 8), 0, VOCAB, dtype=jnp.int32)

    # positive subgraph: 6 node texts -> 16 nodes, 32 edges, 4 edge texts
    x_tok = jax.random.randint(keys[1], (6, 8), 0, VOCAB, dtype=jnp.int32)
    xi = jax.random.randint(keys[2], (16,), 0, 6, dtype=jnp.int32)
    edge_index = jax.random.randint(keys[3], (2, 32), 0, 16, dtype=jnp.int32)
    edge_attr_tok = jax.random.randint(keys[4], (4, 8), 0, VOCAB, dtype=jnp.int32)
    edge_attr_i = jax.random.randint(keys[5], (32,), 0, 4, dtype=jnp.int32)
    positive_sbg = (x_tok, xi, edge_index, edge_attr_tok, edge_attr_i)

    # negative subgraph: 5 node texts -> 12 nodes, 24 edges, 3 edge texts
    nx_tok = jax.random.randint(keys[6], (5, 8), 0, VOCAB, dtype=jnp.int32)
    nxi = jax.random.randint(keys[7], (12,), 0, 5, dtype=jnp.int32)
    nedge_index = jax.random.randint(keys[8], (2, 24), 0, 12, dtype=jnp.int32)
    nedge_attr_tok = jax.random.randint(keys[9], (3, 8), 0, VOCAB, dtype=jnp.int32)
    nedge_attr_i = jax.random.randint(keys[10], (24,), 0, 3, dtype=jnp.int32)
    negative_sbg = (nx_tok, nxi, nedge_index, nedge_attr_tok, nedge_attr_i)

    cqa_emb, sbg_emb, nsbg_emb = model_forward(params, cqa, positive_sbg, negative_sbg)
    jax.block_until_ready((cqa_emb, sbg_emb, nsbg_emb))

    assert cqa_emb.shape == (2, D_MODEL)
    assert sbg_emb.shape == (16, D_MODEL)
    assert nsbg_emb.shape == (12, D_MODEL)
    assert bool(jnp.all(jnp.isfinite(cqa_emb)))
    assert bool(jnp.all(jnp.isfinite(sbg_emb)))
    assert bool(jnp.all(jnp.isfinite(nsbg_emb)))
    print("KERNEL_OK")
</pallas_src>

<mosaic_0001>
module attributes {stable_mosaic.version = 11 : i64} {
  func.func @masked_mean_kernel(%arg0: i32, %arg1: memref<8x8x768xbf16, #tpu.memory_space<vmem>>, %arg2: memref<8x8x1xf32, #tpu.memory_space<vmem>>, %arg3: memref<8x768xf32, #tpu.memory_space<vmem>>) attributes {dimension_semantics = [#tpu.dimension_semantics<parallel>], iteration_bounds = array<i64: 1>, scalar_prefetch = 0 : i64, scratch_operands = 0 : i64, tpu.core_type = #tpu.core_type<tc>, window_params = [{transform_indices = @transform_0, window_bounds = array<i64: 8, 8, 768>}, {transform_indices = @transform_1, window_bounds = array<i64: 8, 8, 1>}, {transform_indices = @transform_2, window_bounds = array<i64: 8, 768>}]} {
    %c0 = arith.constant 0 : index
    %c0_0 = arith.constant 0 : index
    %c0_1 = arith.constant 0 : index
    %0 = vector.load %arg1[%c0, %c0_0, %c0_1] : memref<8x8x768xbf16, #tpu.memory_space<vmem>>, vector<8x8x768xbf16>
    %1 = arith.extf %0 : vector<8x8x768xbf16> to vector<8x8x768xf32>
    %c0_2 = arith.constant 0 : index
    %c0_3 = arith.constant 0 : index
    %c0_4 = arith.constant 0 : index
    %2 = vector.load %arg2[%c0_2, %c0_3, %c0_4] : memref<8x8x1xf32, #tpu.memory_space<vmem>>, vector<8x8x1xf32>
    %3 = vector.broadcast %2 : vector<8x8x1xf32> to vector<8x8x768xf32>
    %4 = arith.mulf %1, %3 : vector<8x8x768xf32>
    %cst = arith.constant dense<0.000000e+00> : vector<8x768xf32>
    %5 = vector.multi_reduction <add>, %4, %cst [1] : vector<8x8x768xf32> to vector<8x768xf32>
    %cst_5 = arith.constant dense<0.000000e+00> : vector<8x1xf32>
    %6 = vector.multi_reduction <add>, %2, %cst_5 [1] : vector<8x8x1xf32> to vector<8x1xf32>
    %cst_6 = arith.constant 0.000000e+00 : f32
    %7 = vector.broadcast %cst_6 : f32 to vector<8x1xf32>
    %8 = arith.cmpf oeq, %6, %7 : vector<8x1xf32>
    %cst_7 = arith.constant 1.000000e+00 : f32
    %9 = vector.broadcast %cst_7 : f32 to vector<8x1xf32>
    %10 = arith.select %8, %9, %6 : vector<8x1xi1>, vector<8x1xf32>
    %11 = tpu.reciprocal %10 {approx = true} : vector<8x1xf32> -> vector<8x1xf32>
    %12 = vector.broadcast %11 : vector<8x1xf32> to vector<8x768xf32>
    %13 = arith.mulf %5, %12 : vector<8x768xf32>
    %c0_8 = arith.constant 0 : index
    %c0_9 = arith.constant 0 : index
    %14 = vector.load %arg3[%c0_8, %c0_9] : memref<8x768xf32, #tpu.memory_space<vmem>>, vector<8x768xf32>
    tpu.vector_store %arg3[%c0_8, %c0_9], %13 {strides = array<i32>} : memref<8x768xf32, #tpu.memory_space<vmem>>, vector<8x768xf32>,
    return
  }
  func.func @transform_0(%arg0: i32) -> (i32, i32, i32) {
    %c0_i32 = arith.constant 0 : i32
    %c0_i32_0 = arith.constant 0 : i32
    %c0_i32_1 = arith.constant 0 : i32
    return %arg0, %c0_i32, %c0_i32_0 : i32, i32, i32
  }
  func.func @transform_1(%arg0: i32) -> (i32, i32, i32) {
    %c0_i32 = arith.constant 0 : i32
    %c0_i32_0 = arith.constant 0 : i32
    %c0_i32_1 = arith.constant 0 : i32
    return %arg0, %c0_i32, %c0_i32_0 : i32, i32, i32
  }
  func.func @transform_2(%arg0: i32) -> (i32, i32) {
    %c0_i32 = arith.constant 0 : i32
    %c0_i32_0 = arith.constant 0 : i32
    return %arg0, %c0_i32 : i32, i32
  }
}

</mosaic_0001>

<llo_original>
// kernel: tpu_custom_call.1
$region0: #{tpu_custom_call.1}
  #allocation0 [shape = 'u32[]', space=smem, size = 0x4, offset = 0x4, fixed_abs, tag = 'smem constant byte address 0x4 - core index']
  #allocation1 [shape = 'u32[144,128]{1,0:T(1,128)}', space=vmem, size = 0x12000, scoped, tag = 'internal scratch']
  %s0 = inlined_call_operand.hbm [shape: bf16[8,8,768], index: 0, kind: input, shape index: {}]
  %s1 = inlined_call_operand.vmem [shape: f32[8,8,1], index: 1, kind: input, shape index: {}]
  %s2 = inlined_call_operand.hbm [shape: f32[8,768], index: 2, kind: output, shape index: {}]
  %s3 = sld [smem:[#allocation0]]
  $region22: #{tpu_custom_call.1} parent=0
    _
  %s5 = ssub.s32 1, %s3
  %s6 = scalar_select 0, %s5, %s3
  $region1: #{tpu_custom_call.1} parent=0
    #allocation2 [shape = 'u8[98304]{0}', space=vmem, size = 0x18000, scoped, tag = 'input window, operand 0, single buffered']
    #allocation3 [shape = 's32[1]{0}', space=sflag, size = 0x4, scoped, tag = 'scoped memory for tpu_custom_call.1']
    #allocation4 [shape = 's32[1]{0}', space=sflag, size = 0x4, scoped, tag = 'scoped memory for tpu_custom_call.1']
    #allocation5 [shape = 'u8[24576]{0}', space=vmem, size = 0x6000, scoped, tag = 'output window, operand 0, single buffered']
    %7 = vsyncpa [#allocation3], 0
    %8 = vsyncpa [#allocation4], 0
    // Predicated region
    $region2: #{tpu_custom_call.1} parent=1 // pred_check
      _
    $region3: #{tpu_custom_call.1} parent=1 // pred_check_branch
      %10 = sbr.rel (0) target = $region5
    $region4: #{tpu_custom_call.1} parent=1 // pred_region
      %s12 = ssub.s32 3072, 3072
      %13 = vsyncadd [#allocation3], %s12
      %s14 = sshll.u32 [#allocation2], 4
      %s15 = int_to_ptr.vmem [resolvable:$true] %s14
      %20 = dma.hbm_to_vmem [thread:$0]  %s0, 3072, %s15, [#allocation3], 384, 384, 24
    $region5: #{tpu_custom_call.1} parent=1 // pred_fallthru
      _
    // Predicated region
    $region6: #{tpu_custom_call.1} parent=1 // pred_check
      _
    $region7: #{tpu_custom_call.1} parent=1 // pred_check_branch
      %22 = sbr.rel (0) target = $region9
    $region8: #{tpu_custom_call.1} parent=1 // pred_region
      _
    $region9: #{tpu_custom_call.1} parent=1 // pred_fallthru
      _
    // Predicated region
    $region10: #{tpu_custom_call.1} parent=1 // pred_check
      _
    $region11: #{tpu_custom_call.1} parent=1 // pred_check_branch
      %24 = sbr.rel (0) target = $region13
    $region12: #{tpu_custom_call.1} parent=1 // pred_region
      %25 = dma.done [#allocation3], 3072
    $region13: #{tpu_custom_call.1} parent=1 // pred_fallthru
      _
    %v26 = vld [vmem:[#allocation2] sm:$0xff]
    %v27 = vld [vmem:[#allocation2 + $0x8] sm:$0xff]
    %v28 = vld [vmem:[#allocation2 + $0x10] sm:$0xff]
    %v29 = vld [vmem:[#allocation2 + $0x18] sm:$0xff]
    %v30 = vld [vmem:[#allocation2 + $0x20] sm:$0xff]
    %v31 = vld [vmem:[#allocation2 + $0x28] sm:$0xff]
    %v32 = vld [vmem:[#allocation2 + $0x30] sm:$0xff]
    %v33 = vld [vmem:[#allocation2 + $0x38] sm:$0xff]
    %v34 = vld [vmem:[#allocation2 + $0x40] sm:$0xff]
    %v35 = vld [vmem:[#allocation2 + $0x48] sm:$0xff]
    %v36 = vld [vmem:[#allocation2 + $0x50] sm:$0xff]
    %v37 = vld [vmem:[#allocation2 + $0x58] sm:$0xff]
    %v38 = vld [vmem:[#allocation2 + $0x60] sm:$0xff]
    %v39 = vld [vmem:[#allocation2 + $0x68] sm:$0xff]
    %v40 = vld [vmem:[#allocation2 + $0x70] sm:$0xff]
    %v41 = vld [vmem:[#allocation2 + $0x78] sm:$0xff]
    %v42 = vld [vmem:[#allocation2 + $0x80] sm:$0xff]
    %v43 = vld [vmem:[#allocation2 + $0x88] sm:$0xff]
    %v44 = vld [vmem:[#allocation2 + $0x90] sm:$0xff]
    %v45 = vld [vmem:[#allocation2 + $0x98] sm:$0xff]
    %v46 = vld [vmem:[#allocation2 + $0xa0] sm:$0xff]
    %v47 = vld [vmem:[#allocation2 + $0xa8] sm:$0xff]
    %v48 = vld [vmem:[#allocation2 + $0xb0] sm:$0xff]
    %v49 = vld [vmem:[#allocation2 + $0xb8] sm:$0xff]
    %v50 = vunpack.c.l.bf16 %v26
    %v51 = vunpack.c.h.bf16 %v26
    %v52 = vunpack.c.l.bf16 %v27
    %v53 = vunpack.c.h.bf16 %v27
    %v54 = vunpack.c.l.bf16 %v28
    %v55 = vunpack.c.h.bf16 %v28
    %v56 = vunpack.c.l.bf16 %v29
    %v57 = vunpack.c.h.bf16 %v29
    %v58 = vunpack.c.l.bf16 %v30
    %v59 = vunpack.c.h.bf16 %v30
    %v60 = vunpack.c.l.bf16 %v31
    %v61 = vunpack.c.h.bf16 %v31
    %v62 = vunpack.c.l.bf16 %v32
    %v63 = vunpack.c.h.bf16 %v32
    %v64 = vunpack.c.l.bf16 %v33
    %v65 = vunpack.c.h.bf16 %v33
    %v66 = vunpack.c.l.bf16 %v34
    %v67 = vunpack.c.h.bf16 %v34
    %v68 = vunpack.c.l.bf16 %v35
    %v69 = vunpack.c.h.bf16 %v35
    %v70 = vunpack.c.l.bf16 %v36
    %v71 = vunpack.c.h.bf16 %v36
    %v72 = vunpack.c.l.bf16 %v37
    %v73 = vunpack.c.h.bf16 %v37
    %v74 = vunpack.c.l.bf16 %v38
    %v75 = vunpack.c.h.bf16 %v38
    %v76 = vunpack.c.l.bf16 %v39
    %v77 = vunpack.c.h.bf16 %v39
    %v78 = vunpack.c.l.bf16 %v40
    %v79 = vunpack.c.h.bf16 %v40
    %v80 = vunpack.c.l.bf16 %v41
    %v81 = vunpack.c.h.bf16 %v41
    %v82 = vunpack.c.l.bf16 %v42
    %v83 = vunpack.c.h.bf16 %v42
    %v84 = vunpack.c.l.bf16 %v43
    %v85 = vunpack.c.h.bf16 %v43
    %v86 = vunpack.c.l.bf16 %v44
    %v87 = vunpack.c.h.bf16 %v44
    %v88 = vunpack.c.l.bf16 %v45
    %v89 = vunpack.c.h.bf16 %v45
    %v90 = vunpack.c.l.bf16 %v46
    %v91 = vunpack.c.h.bf16 %v46
    %v92 = vunpack.c.l.bf16 %v47
    %v93 = vunpack.c.h.bf16 %v47
    %v94 = vunpack.c.l.bf16 %v48
    %v95 = vunpack.c.h.bf16 %v48
    %v96 = vunpack.c.l.bf16 %v49
    %v97 = vunpack.c.h.bf16 %v49
    %v98 = vld [vmem:[%s1] sm:$0xff]
    %v99 = vld [vmem:[%s1 + $0x8] sm:$0xff]
    %v100 = vld [vmem:[%s1 + $0x10] sm:$0xff]
    %v101 = vld [vmem:[%s1 + $0x18] sm:$0xff]
    %v102 = vld [vmem:[%s1 + $0x20] sm:$0xff]
    %v103 = vld [vmem:[%s1 + $0x28] sm:$0xff]
    %v104 = vld [vmem:[%s1 + $0x30] sm:$0xff]
    %v105 = vld [vmem:[%s1 + $0x38] sm:$0xff]
    %107 = vset.pattern.permute.xlu0 0
    %108 = vperm.xlu0 %107, %v98
    %v109 = vpop.permute.xlu0 %108
    %112 = vset.pattern.permute.xlu0 0
    %113 = vperm.xlu0 %112, %v99
    %v114 = vpop.permute.xlu0 %113
    %117 = vset.pattern.permute.xlu0 0
    %118 = vperm.xlu0 %117, %v100
    %v119 = vpop.permute.xlu0 %118
    %122 = vset.pattern.permute.xlu0 0
    %123 = vperm.xlu0 %122, %v101
    %v124 = vpop.permute.xlu0 %123
    %127 = vset.pattern.permute.xlu0 0
    %128 = vperm.xlu0 %127, %v102
    %v129 = vpop.permute.xlu0 %128
    %132 = vset.pattern.permute.xlu0 0
    %133 = vperm.xlu0 %132, %v103
    %v134 = vpop.permute.xlu0 %133
    %137 = vset.pattern.permute.xlu0 0
    %138 = vperm.xlu0 %137, %v104
    %v139 = vpop.permute.xlu0 %138
    %142 = vset.pattern.permute.xlu0 0
    %143 = vperm.xlu0 %142, %v105
    %v144 = vpop.permute.xlu0 %143
    %v146 = vmul.f32 %v50, %v109
    %v147 = vmul.f32 %v51, %v109
    %v148 = vmul.f32 %v52, %v109
    %v149 = vmul.f32 %v53, %v109
    %v150 = vmul.f32 %v54, %v109
    %v151 = vmul.f32 %v55, %v109
    %v152 = vmul.f32 %v56, %v114
    %v153 = vmul.f32 %v57, %v114
    %v154 = vmul.f32 %v58, %v114
    %v155 = vmul.f32 %v59, %v114
    %v156 = vmul.f32 %v60, %v114
    %v157 = vmul.f32 %v61, %v114
    %v158 = vmul.f32 %v62, %v119
    %v159 = vmul.f32 %v63, %v119
    %v160 = vmul.f32 %v64, %v119
    %v161 = vmul.f32 %v65, %v119
    %v162 = vmul.f32 %v66, %v119
    %v163 = vmul.f32 %v67, %v119
    %v164 = vmul.f32 %v68, %v124
    %v165 = vmul.f32 %v69, %v124
    %v166 = vmul.f32 %v70, %v124
    %v167 = vmul.f32 %v71, %v124
    %v168 = vmul.f32 %v72, %v124
    %v169 = vmul.f32 %v73, %v124
    %v170 = vmul.f32 %v74, %v129
    %v171 = vmul.f32 %v75, %v129
    %v172 = vmul.f32 %v76, %v129
    %v173 = vmul.f32 %v77, %v129
    %v174 = vmul.f32 %v78, %v129
    %v175 = vmul.f32 %v79, %v129
    %v176 = vmul.f32 %v80, %v134
    %v177 = vmul.f32 %v81, %v134
    %v178 = vmul.f32 %v82, %v134
    %v179 = vmul.f32 %v83, %v134
    %v180 = vmul.f32 %v84, %v134
    %v181 = vmul.f32 %v85, %v134
    %v182 = vmul.f32 %v86, %v139
    %v183 = vmul.f32 %v87, %v139
    %v184 = vmul.f32 %v88, %v139
    %v185 = vmul.f32 %v89, %v139
    %v186 = vmul.f32 %v90, %v139
    %v187 = vmul.f32 %v91, %v139
    %v188 = vmul.f32 %v92, %v144
    %v189 = vmul.f32 %v93, %v144
    %v190 = vmul.f32 %v94, %v144
    %v191 = vmul.f32 %v95, %v144
    %v192 = vmul.f32 %v96, %v144
    %v193 = vmul.f32 %v97, %v144
    %v194 = vrot.slane %v146, 4
    %v195 = vadd.f32 %v146, %v194
    %v196 = vrot.slane %v195, 2
    %v197 = vadd.f32 %v195, %v196
    %v198 = vrot.slane %v197, 1
    %v199 = vadd.f32 %v197, %v198
    %v200 = vrot.slane %v147, 4
    %v201 = vadd.f32 %v147, %v200
    %v202 = vrot.slane %v201, 2
    %v203 = vadd.f32 %v201, %v202
    %v204 = vrot.slane %v203, 1
    %v205 = vadd.f32 %v203, %v204
    %v206 = vrot.slane %v148, 4
    %v207 = vadd.f32 %v148, %v206
    %v208 = vrot.slane %v207, 2
    %v209 = vadd.f32 %v207, %v208
    %v210 = vrot.slane %v209, 1
    %v211 = vadd.f32 %v209, %v210
    %v212 = vrot.slane %v149, 4
    %v213 = vadd.f32 %v149, %v212
    %v214 = vrot.slane %v213, 2
    %v215 = vadd.f32 %v213, %v214
    %v216 = vrot.slane %v215, 1
    %v217 = vadd.f32 %v215, %v216
    %v218 = vrot.slane %v150, 4
    %v219 = vadd.f32 %v150, %v218
    %v220 = vrot.slane %v219, 2
    %v221 = vadd.f32 %v219, %v220
    %v222 = vrot.slane %v221, 1
    %v223 = vadd.f32 %v221, %v222
    %v224 = vrot.slane %v151, 4
    %v225 = vadd.f32 %v151, %v224
    %v226 = vrot.slane %v225, 2
    %v227 = vadd.f32 %v225, %v226
    %v228 = vrot.slane %v227, 1
    %v229 = vadd.f32 %v227, %v228
    %v230 = vrot.slane %v152, 4
    %v231 = vadd.f32 %v152, %v230
    %v232 = vrot.slane %v231, 2
    %v233 = vadd.f32 %v231, %v232
    %v234 = vrot.slane %v233, 1
    %v235 = vadd.f32 %v233, %v234
    %v236 = vrot.slane %v153, 4
    %v237 = vadd.f32 %v153, %v236
    %v238 = vrot.slane %v237, 2
    %v239 = vadd.f32 %v237, %v238
    %v240 = vrot.slane %v239, 1
    %v241 = vadd.f32 %v239, %v240
    %v242 = vrot.slane %v154, 4
    %v243 = vadd.f32 %v154, %v242
    %v244 = vrot.slane %v243, 2
    %v245 = vadd.f32 %v243, %v244
    %v246 = vrot.slane %v245, 1
    %v247 = vadd.f32 %v245, %v246
    %v248 = vrot.slane %v155, 4
    %v249 = vadd.f32 %v155, %v248
    %v250 = vrot.slane %v249, 2
    %v251 = vadd.f32 %v249, %v250
    %v252 = vrot.slane %v251, 1
    %v253 = vadd.f32 %v251, %v252
    %v254 = vrot.slane %v156, 4
    %v255 = vadd.f32 %v156, %v254
    %v256 = vrot.slane %v255, 2
    %v257 = vadd.f32 %v255, %v256
    %v258 = vrot.slane %v257, 1
    %v259 = vadd.f32 %v257, %v258
    %v260 = vrot.slane %v157, 4
    %v261 = vadd.f32 %v157, %v260
    %v262 = vrot.slane %v261, 2
    %v263 = vadd.f32 %v261, %v262
    %v264 = vrot.slane %v263, 1
    %v265 = vadd.f32 %v263, %v264
    %v266 = vrot.slane %v158, 4
    %v267 = vadd.f32 %v158, %v266
    %v268 = vrot.slane %v267, 2
    %v269 = vadd.f32 %v267, %v268
    %v270 = vrot.slane %v269, 1
    %v271 = vadd.f32 %v269, %v270
    %v272 = vrot.slane %v159, 4
    %v273 = vadd.f32 %v159, %v272
    %v274 = vrot.slane %v273, 2
    %v275 = vadd.f32 %v273, %v274
    %v276 = vrot.slane %v275, 1
    %v277 = vadd.f32 %v275, %v276
    %v278 = vrot.slane %v160, 4
    %v279 = vadd.f32 %v160, %v278
    %v280 = vrot.slane %v279, 2
    %v281 = vadd.f32 %v279, %v280
    %v282 = vrot.slane %v281, 1
    %v283 = vadd.f32 %v281, %v282
    %v284 = vrot.slane %v161, 4
    %v285 = vadd.f32 %v161, %v284
    %v286 = vrot.slane %v285, 2
    %v287 = vadd.f32 %v285, %v286
    %v288 = vrot.slane %v287, 1
    %v289 = vadd.f32 %v287, %v288
    %v290 = vrot.slane %v162, 4
    %v291 = vadd.f32 %v162, %v290
    %v292 = vrot.slane %v291, 2
    %v293 = vadd.f32 %v291, %v292
    %v294 = vrot.slane %v293, 1
    %v295 = vadd.f32 %v293, %v294
    %v296 = vrot.slane %v163, 4
    %v297 = vadd.f32 %v163, %v296
    %v298 = vrot.slane %v297, 2
    %v299 = vadd.f32 %v297, %v298
    %v300 = vrot.slane %v299, 1
    %v301 = vadd.f32 %v299, %v300
    %v302 = vrot.slane %v164, 4
    %v303 = vadd.f32 %v164, %v302
    %v304 = vrot.slane %v303, 2
    %v305 = vadd.f32 %v303, %v304
    %v306 = vrot.slane %v305, 1
    %v307 = vadd.f32 %v305, %v306
    %v308 = vrot.slane %v165, 4
    %v309 = vadd.f32 %v165, %v308
    %v310 = vrot.slane %v309, 2
    %v311 = vadd.f32 %v309, %v310
    %v312 = vrot.slane %v311, 1
    %v313 = vadd.f32 %v311, %v312
    %v314 = vrot.slane %v166, 4
    %v315 = vadd.f32 %v166, %v314
    %v316 = vrot.slane %v315, 2
    %v317 = vadd.f32 %v315, %v316
    %v318 = vrot.slane %v317, 1
    %v319 = vadd.f32 %v317, %v318
    %v320 = vrot.slane %v167, 4
    %v321 = vadd.f32 %v167, %v320
    %v322 = vrot.slane %v321, 2
    %v323 = vadd.f32 %v321, %v322
    %v324 = vrot.slane %v323, 1
    %v325 = vadd.f32 %v323, %v324
    %v326 = vrot.slane %v168, 4
    %v327 = vadd.f32 %v168, %v326
    %v328 = vrot.slane %v327, 2
    %v329 = vadd.f32 %v327, %v328
    %v330 = vrot.slane %v329, 1
    %v331 = vadd.f32 %v329, %v330
    %v332 = vrot.slane %v169, 4
    %v333 = vadd.f32 %v169, %v332
    %v334 = vrot.slane %v333, 2
    %v335 = vadd.f32 %v333, %v334
    %v336 = vrot.slane %v335, 1
    %v337 = vadd.f32 %v335, %v336
    %v338 = vrot.slane %v170, 4
    %v339 = vadd.f32 %v170, %v338
    %v340 = vrot.slane %v339, 2
    %v341 = vadd.f32 %v339, %v340
    %v342 = vrot.slane %v341, 1
    %v343 = vadd.f32 %v341, %v342
    %v344 = vrot.slane %v171, 4
    %v345 = vadd.f32 %v171, %v344
    %v346 = vrot.slane %v345, 2
    %v347 = vadd.f32 %v345, %v346
    %v348 = vrot.slane %v347, 1
    %v349 = vadd.f32 %v347, %v348
    %v350 = vrot.slane %v172, 4
    %v351 = vadd.f32 %v172, %v350
    %v352 = vrot.slane %v351, 2
    %v353 = vadd.f32 %v351, %v352
    %v354 = vrot.slane %v353, 1
    %v355 = vadd.f32 %v353, %v354
    %v356 = vrot.slane %v173, 4
    %v357 = vadd.f32 %v173, %v356
    %v358 = vrot.slane %v357, 2
    %v359 = vadd.f32 %v357, %v358
    %v360 = vrot.slane %v359, 1
    %v361 = vadd.f32 %v359, %v360
    %v362 = vrot.slane %v174, 4
    %v363 = vadd.f32 %v174, %v362
    %v364 = vrot.slane %v363, 2
    %v365 = vadd.f32 %v363, %v364
    %v366 = vrot.slane %v365, 1
    %v367 = vadd.f32 %v365, %v366
    %v368 = vrot.slane %v175, 4
    %v369 = vadd.f32 %v175, %v368
    %v370 = vrot.slane %v369, 2
    %v371 = vadd.f32 %v369, %v370
    %v372 = vrot.slane %v371, 1
    %v373 = vadd.f32 %v371, %v372
    %v374 = vrot.slane %v176, 4
    %v375 = vadd.f32 %v176, %v374
    %v376 = vrot.slane %v375, 2
    %v377 = vadd.f32 %v375, %v376
    %v378 = vrot.slane %v377, 1
    %v379 = vadd.f32 %v377, %v378
    %v380 = vrot.slane %v177, 4
    %v381 = vadd.f32 %v177, %v380
    %v382 = vrot.slane %v381, 2
    %v383 = vadd.f32 %v381, %v382
    %v384 = vrot.slane %v383, 1
    %v385 = vadd.f32 %v383, %v384
    %v386 = vrot.slane %v178, 4
    %v387 = vadd.f32 %v178, %v386
    %v388 = vrot.slane %v387, 2
    %v389 = vadd.f32 %v387, %v388
    %v390 = vrot.slane %v389, 1
    %v391 = vadd.f32 %v389, %v390
    %v392 = vrot.slane %v179, 4
    %v393 = vadd.f32 %v179, %v392
    %v394 = vrot.slane %v393, 2
    %v395 = vadd.f32 %v393, %v394
    %v396 = vrot.slane %v395, 1
    %v397 = vadd.f32 %v395, %v396
    %v398 = vrot.slane %v180, 4
    %v399 = vadd.f32 %v180, %v398
    %v400 = vrot.slane %v399, 2
    %v401 = vadd.f32 %v399, %v400
    %v402 = vrot.slane %v401, 1
    %v403 = vadd.f32 %v401, %v402
    %v404 = vrot.slane %v181, 4
    %v405 = vadd.f32 %v181, %v404
    %v406 = vrot.slane %v405, 2
    %v407 = vadd.f32 %v405, %v406
    %v408 = vrot.slane %v407, 1
    %v409 = vadd.f32 %v407, %v408
    %v410 = vrot.slane %v182, 4
    %v411 = vadd.f32 %v182, %v410
    %v412 = vrot.slane %v411, 2
    %v413 = vadd.f32 %v411, %v412
    %v414 = vrot.slane %v413, 1
    %v415 = vadd.f32 %v413, %v414
    %v416 = vrot.slane %v183, 4
    %v417 = vadd.f32 %v183, %v416
    %v418 = vrot.slane %v417, 2
    %v419 = vadd.f32 %v417, %v418
    %v420 = vrot.slane %v419, 1
    %v421 = vadd.f32 %v419, %v420
    %v422 = vrot.slane %v184, 4
    %v423 = vadd.f32 %v184, %v422
    %v424 = vrot.slane %v423, 2
    %v425 = vadd.f32 %v423, %v424
    %v426 = vrot.slane %v425, 1
    %v427 = vadd.f32 %v425, %v426
    %v428 = vrot.slane %v185, 4
    %v429 = vadd.f32 %v185, %v428
    %v430 = vrot.slane %v429, 2
    %v431 = vadd.f32 %v429, %v430
    %v432 = vrot.slane %v431, 1
    %v433 = vadd.f32 %v431, %v432
    %v434 = vrot.slane %v186, 4
    %v435 = vadd.f32 %v186, %v434
    %v436 = vrot.slane %v435, 2
    %v437 = vadd.f32 %v435, %v436
    %v438 = vrot.slane %v437, 1
    %v439 = vadd.f32 %v437, %v438
    %v440 = vrot.slane %v187, 4
    %v441 = vadd.f32 %v187, %v440
    %v442 = vrot.slane %v441, 2
    %v443 = vadd.f32 %v441, %v442
    %v444 = vrot.slane %v443, 1
    %v445 = vadd.f32 %v443, %v444
    %v446 = vrot.slane %v188, 4
    %v447 = vadd.f32 %v188, %v446
    %v448 = vrot.slane %v447, 2
    %v449 = vadd.f32 %v447, %v448
    %v450 = vrot.slane %v449, 1
    %v451 = vadd.f32 %v449, %v450
    %v452 = vrot.slane %v189, 4
    %v453 = vadd.f32 %v189, %v452
    %v454 = vrot.slane %v453, 2
    %v455 = vadd.f32 %v453, %v454
    %v456 = vrot.slane %v455, 1
    %v457 = vadd.f32 %v455, %v456
    %v458 = vrot.slane %v190, 4
    %v459 = vadd.f32 %v190, %v458
    %v460 = vrot.slane %v459, 2
    %v461 = vadd.f32 %v459, %v460
    %v462 = vrot.slane %v461, 1
    %v463 = vadd.f32 %v461, %v462
    %v464 = vrot.slane %v191, 4
    %v465 = vadd.f32 %v191, %v464
    %v466 = vrot.slane %v465, 2
    %v467 = vadd.f32 %v465, %v466
    %v468 = vrot.slane %v467, 1
    %v469 = vadd.f32 %v467, %v468
    %v470 = vrot.slane %v192, 4
    %v471 = vadd.f32 %v192, %v470
    %v472 = vrot.slane %v471, 2
    %v473 = vadd.f32 %v471, %v472
    %v474 = vrot.slane %v473, 1
    %v475 = vadd.f32 %v473, %v474
    %v476 = vrot.slane %v193, 4
    %v477 = vadd.f32 %v193, %v476
    %v478 = vrot.slane %v477, 2
    %v479 = vadd.f32 %v477, %v478
    %v480 = vrot.slane %v479, 1
    %v481 = vadd.f32 %v479, %v480
    %vm482 = vcmask 7168
    %v483 = vsel %vm482, %v98, 0.0
    %v484 = vrot.slane %v483, 4
    %v485 = vadd.f32 %v483, %v484
    %v486 = vrot.slane %v485, 2
    %v487 = vadd.f32 %v485, %v486
    %v488 = vrot.slane %v487, 1
    %v489 = vadd.f32 %v487, %v488
    %v490 = vsel %vm482, %v99, 0.0
    %v491 = vrot.slane %v490, 4
    %v492 = vadd.f32 %v490, %v491
    %v493 = vrot.slane %v492, 2
    %v494 = vadd.f32 %v492, %v493
    %v495 = vrot.slane %v494, 1
    %v496 = vadd.f32 %v494, %v495
    %v497 = vsel %vm482, %v100, 0.0
    %v498 = vrot.slane %v497, 4
    %v499 = vadd.f32 %v497, %v498
    %v500 = vrot.slane %v499, 2
    %v501 = vadd.f32 %v499, %v500
    %v502 = vrot.slane %v501, 1
    %v503 = vadd.f32 %v501, %v502
    %v504 = vsel %vm482, %v101, 0.0
    %v505 = vrot.slane %v504, 4
    %v506 = vadd.f32 %v504, %v505
    %v507 = vrot.slane %v506, 2
    %v508 = vadd.f32 %v506, %v507
    %v509 = vrot.slane %v508, 1
    %v510 = vadd.f32 %v508, %v509
    %v511 = vsel %vm482, %v102, 0.0
    %v512 = vrot.slane %v511, 4
    %v513 = vadd.f32 %v511, %v512
    %v514 = vrot.slane %v513, 2
    %v515 = vadd.f32 %v513, %v514
    %v516 = vrot.slane %v515, 1
    %v517 = vadd.f32 %v515, %v516
    %v518 = vsel %vm482, %v103, 0.0
    %v519 = vrot.slane %v518, 4
    %v520 = vadd.f32 %v518, %v519
    %v521 = vrot.slane %v520, 2
    %v522 = vadd.f32 %v520, %v521
    %v523 = vrot.slane %v522, 1
    %v524 = vadd.f32 %v522, %v523
    %v525 = vsel %vm482, %v104, 0.0
    %v526 = vrot.slane %v525, 4
    %v527 = vadd.f32 %v525, %v526
    %v528 = vrot.slane %v527, 2
    %v529 = vadd.f32 %v527, %v528
    %v530 = vrot.slane %v529, 1
    %v531 = vadd.f32 %v529, %v530
    %v532 = vsel %vm482, %v105, 0.0
    %v533 = vrot.slane %v532, 4
    %v534 = vadd.f32 %v532, %v533
    %v535 = vrot.slane %v534, 2
    %v536 = vadd.f32 %v534, %v535
    %v537 = vrot.slane %v536, 1
    %v538 = vadd.f32 %v536, %v537
    %vm539 = vcmp.eq.f32.partialorder %v489, 0.0
    %vm540 = vcmp.eq.f32.partialorder %v496, 0.0
    %vm541 = vcmp.eq.f32.partialorder %v503, 0.0
    %vm542 = vcmp.eq.f32.partialorder %v510, 0.0
    %vm543 = vcmp.eq.f32.partialorder %v517, 0.0
    %vm544 = vcmp.eq.f32.partialorder %v524, 0.0
    %vm545 = vcmp.eq.f32.partialorder %v531, 0.0
    %vm546 = vcmp.eq.f32.partialorder %v538, 0.0
    %v547 = vsel %vm539, 1.0, %v489
    %v548 = vsel %vm540, 1.0, %v496
    %v549 = vsel %vm541, 1.0, %v503
    %v550 = vsel %vm542, 1.0, %v510
    %v551 = vsel %vm543, 1.0, %v517
    %v552 = vsel %vm544, 1.0, %v524
    %v553 = vsel %vm545, 1.0, %v531
    %v554 = vsel %vm546, 1.0, %v538
    %v555 = vrcp.pop %v547
    %v556 = vrcp.pop %v548
    %v557 = vrcp.pop %v549
    %v558 = vrcp.pop %v550
    %v559 = vrcp.pop %v551
    %v560 = vrcp.pop %v552
    %v561 = vrcp.pop %v553
    %v562 = vrcp.pop %v554
    %564 = vset.pattern.permute.xlu0 0
    %565 = vperm.xlu0 %564, %v555
    %v566 = vpop.permute.xlu0 %565
    %569 = vset.pattern.permute.xlu0 0
    %570 = vperm.xlu0 %569, %v556
    %v571 = vpop.permute.xlu0 %570
    %574 = vset.pattern.permute.xlu0 0
    %575 = vperm.xlu0 %574, %v557
    %v576 = vpop.permute.xlu0 %575
    %579 = vset.pattern.permute.xlu0 0
    %580 = vperm.xlu0 %579, %v558
    %v581 = vpop.permute.xlu0 %580
    %584 = vset.pattern.permute.xlu0 0
    %585 = vperm.xlu0 %584, %v559
    %v586 = vpop.permute.xlu0 %585
    %589 = vset.pattern.permute.xlu0 0
    %590 = vperm.xlu0 %589, %v560
    %v591 = vpop.permute.xlu0 %590
    %594 = vset.pattern.permute.xlu0 0
    %595 = vperm.xlu0 %594, %v561
    %v596 = vpop.permute.xlu0 %595
    %599 = vset.pattern.permute.xlu0 0
    %600 = vperm.xlu0 %599, %v562
    %v601 = vpop.permute.xlu0 %600
    %v603 = vmul.f32 %v199, %v566
    %v604 = vmul.f32 %v205, %v566
    %v605 = vmul.f32 %v211, %v566
    %v606 = vmul.f32 %v217, %v566
    %v607 = vmul.f32 %v223, %v566
    %v608 = vmul.f32 %v229, %v566
    %v609 = vmul.f32 %v235, %v571
    %v610 = vmul.f32 %v241, %v571
    %v611 = vmul.f32 %v247, %v571
    %v612 = vmul.f32 %v253, %v571
    %v613 = vmul.f32 %v259, %v571
    %v614 = vmul.f32 %v265, %v571
    %v615 = vmul.f32 %v271, %v576
    %v616 = vmul.f32 %v277, %v576
    %v617 = vmul.f32 %v283, %v576
    %v618 = vmul.f32 %v289, %v576
    %v619 = vmul.f32 %v295, %v576
    %v620 = vmul.f32 %v301, %v576
    %v621 = vmul.f32 %v307, %v581
    %v622 = vmul.f32 %v313, %v581
    %v623 = vmul.f32 %v319, %v581
    %v624 = vmul.f32 %v325, %v581
    %v625 = vmul.f32 %v331, %v581
    %v626 = vmul.f32 %v337, %v581
    %v627 = vmul.f32 %v343, %v586
    %v628 = vmul.f32 %v349, %v586
    %v629 = vmul.f32 %v355, %v586
    %v630 = vmul.f32 %v361, %v586
    %v631 = vmul.f32 %v367, %v586
    %v632 = vmul.f32 %v373, %v586
    %v633 = vmul.f32 %v379, %v591
    %v634 = vmul.f32 %v385, %v591
    %v635 = vmul.f32 %v391, %v591
    %v636 = vmul.f32 %v397, %v591
    %v637 = vmul.f32 %v403, %v591
    %v638 = vmul.f32 %v409, %v591
    %v639 = vmul.f32 %v415, %v596
    %v640 = vmul.f32 %v421, %v596
    %v641 = vmul.f32 %v427, %v596
    %v642 = vmul.f32 %v433, %v596
    %v643 = vmul.f32 %v439, %v596
    %v644 = vmul.f32 %v445, %v596
    %v645 = vmul.f32 %v451, %v601
    %v646 = vmul.f32 %v457, %v601
    %v647 = vmul.f32 %v463, %v601
    %v648 = vmul.f32 %v469, %v601
    %v649 = vmul.f32 %v475, %v601
    %v650 = vmul.f32 %v481, %v601
    %vm699 = vcmask 1041409
    %v700 = vsel %vm699, %v609, %v603
    %vm701 = vcmask 1042434
    %v702 = vsel %vm701, %v615, %v700
    %vm703 = vcmask 1043459
    %v704 = vsel %vm703, %v621, %v702
    %vm705 = vcmask 1044484
    %v706 = vsel %vm705, %v627, %v704
    %vm707 = vcmask 1045509
    %v708 = vsel %vm707, %v633, %v706
    %vm709 = vcmask 1046534
    %v710 = vsel %vm709, %v639, %v708
    %vm711 = vcmask 1047559
    %v712 = vsel %vm711, %v645, %v710
    %v713 = vsel %vm699, %v610, %v604
    %v714 = vsel %vm701, %v616, %v713
    %v715 = vsel %vm703, %v622, %v714
    %v716 = vsel %vm705, %v628, %v715
    %v717 = vsel %vm707, %v634, %v716
    %v718 = vsel %vm709, %v640, %v717
    %v719 = vsel %vm711, %v646, %v718
    %v720 = vsel %vm699, %v611, %v605
    %v721 = vsel %vm701, %v617, %v720
    %v722 = vsel %vm703, %v623, %v721
    %v723 = vsel %vm705, %v629, %v722
    %v724 = vsel %vm707, %v635, %v723
    %v725 = vsel %vm709, %v641, %v724
    %v726 = vsel %vm711, %v647, %v725
    %v727 = vsel %vm699, %v612, %v606
    %v728 = vsel %vm701, %v618, %v727
    %v729 = vsel %vm703, %v624, %v728
    %v730 = vsel %vm705, %v630, %v729
    %v731 = vsel %vm707, %v636, %v730
    %v732 = vsel %vm709, %v642, %v731
    %v733 = vsel %vm711, %v648, %v732
    %v734 = vsel %vm699, %v613, %v607
    %v735 = vsel %vm701, %v619, %v734
    %v736 = vsel %vm703, %v625, %v735
    %v737 = vsel %vm705, %v631, %v736
    %v738 = vsel %vm707, %v637, %v737
    %v739 = vsel %vm709, %v643, %v738
    %v740 = vsel %vm711, %v649, %v739
    %v741 = vsel %vm699, %v614, %v608
    %v742 = vsel %vm701, %v620, %v741
    %v743 = vsel %vm703, %v626, %v742
    %v744 = vsel %vm705, %v632, %v743
    %v745 = vsel %vm707, %v638, %v744
    %v746 = vsel %vm709, %v644, %v745
    %v747 = vsel %vm711, %v650, %v746
    %754 = vst [vmem:[#allocation5] sm:$0xff] %v712
    %755 = vst [vmem:[#allocation5 + $0x8] sm:$0xff] %v719
    %756 = vst [vmem:[#allocation5 + $0x10] sm:$0xff] %v726
    %757 = vst [vmem:[#allocation5 + $0x18] sm:$0xff] %v733
    %758 = vst [vmem:[#allocation5 + $0x20] sm:$0xff] %v740
    %759 = vst [vmem:[#allocation5 + $0x28] sm:$0xff] %v747
    // Predicated region
    $region14: #{tpu_custom_call.1} parent=1 // pred_check
      _
    $region15: #{tpu_custom_call.1} parent=1 // pred_check_branch
      %761 = sbr.rel (0) target = $region17
    $region16: #{tpu_custom_call.1} parent=1 // pred_region
      %s763 = ssub.s32 768, 768
      %764 = vsyncadd [#allocation4], %s763
      %s766 = sshll.u32 [#allocation5], 4
      %s767 = int_to_ptr.vmem [resolvable:$true] %s766
      %769 = dma.vmem_to_hbm [thread:$0]  %s767, 768, %s2, [#allocation4]
    $region17: #{tpu_custom_call.1} parent=1 // pred_fallthru
      _
    // Predicated region
    $region18: #{tpu_custom_call.1} parent=1 // pred_check
      _
    $region19: #{tpu_custom_call.1} parent=1 // pred_check_branch
      %771 = sbr.rel (0) target = $region21
    $region20: #{tpu_custom_call.1} parent=1 // pred_region
      %772 = dma.done [#allocation4], 768
    $region21: #{tpu_custom_call.1} parent=1 // pred_fallthru
      _
    %773 = vsyncpa [#allocation3], 1
    %774 = vsyncpa [#allocation4], 1

</llo_original>
